<compile_context>
chip_gen: v6e
topology: v6e:2x2x1
jax: 0.10.0
libtpu: 0.0.40
codegen_flags: <defaults>
</compile_context>

<pallas_src>
import functools

import jax
import jax.numpy as jnp
from jax.experimental import pallas as pl
from jax.experimental.pallas import tpu as pltpu


_VMEM_BUDGET_BYTES = 8 * 1024 * 1024  # double-buffered (input + output) blocks


def _copy_kernel(x_ref, o_ref):
    """Pure pipelined copy: x2 channel tile -> out[:, :C2] channel tile."""
    o_ref[...] = x_ref[...]


def _pad_kernel_4d(x1_ref, out_alias_ref, o_ref, *, pad_top, pad_bottom,
                   pad_left, pad_right):
    """Zero-pad an x1 channel tile spatially and store it into out[:, C2:].

    Width padding is composed in registers (lane-axis concat with zero slabs)
    so the big interior store is issued exactly once; the top/bottom zero
    bands are separate non-overlapping stores.
    """
    del out_alias_ref  # only present for input/output aliasing
    v = x1_ref[...]                                     # (1, tc, h_in, w_in)
    b, tc, h_in, w_in = v.shape
    dt = v.dtype
    if pad_left or pad_right:
        parts = []
        if pad_left:
            parts.append(jnp.zeros((b, tc, h_in, pad_left), dt))
        parts.append(v)
        if pad_right:
            parts.append(jnp.zeros((b, tc, h_in, pad_right), dt))
        v = jnp.concatenate(parts, axis=3)
    w_out = w_in + pad_left + pad_right
    if pad_top:
        o_ref[:, :, 0:pad_top, :] = jnp.zeros((b, tc, pad_top, w_out), dt)
    o_ref[:, :, pad_top:pad_top + h_in, :] = v
    if pad_bottom:
        o_ref[:, :, pad_top + h_in:pad_top + h_in + pad_bottom, :] = (
            jnp.zeros((b, tc, pad_bottom, w_out), dt))


def _pad_kernel_flat(x1_ref, out_alias_ref, o_ref, *, pad_top, pad_bottom, w):
    """Same as _pad_kernel_4d on an (N, C, H*W) lane-dense layout.

    Only used when no width padding is required, so x1 rows are already
    contiguous inside the flattened output rows.
    """
    del out_alias_ref
    v = x1_ref[...]                                     # (1, tc, h_in * w)
    b, tc, hw_in = v.shape
    dt = v.dtype
    off = pad_top * w
    if pad_top:
        o_ref[:, :, 0:off] = jnp.zeros((b, tc, off), dt)
    o_ref[:, :, off:off + hw_in] = v
    if pad_bottom:
        o_ref[:, :, off + hw_in:off + hw_in + pad_bottom * w] = (
            jnp.zeros((b, tc, pad_bottom * w), dt))


def _pick_channel_tile(c_div, cap_hint, in_elems, out_elems, itemsize,
                       multiple_of):
    """Largest channel tile that divides `c_div`, is a multiple of
    `multiple_of`, and keeps double-buffered (input + output) blocks under the
    VMEM budget.  Returns None if no such tile exists."""
    per_ch = 2 * (in_elems + out_elems) * itemsize
    cap = max(1, _VMEM_BUDGET_BYTES // per_ch)
    cap = min(cap, c_div, max(cap_hint, multiple_of))
    for t in range(cap, 0, -1):
        if c_div % t == 0 and t % multiple_of == 0:
            return t
    return None


def _concat_impl(x1, x2):
    n, c1, h1, w1 = x1.shape
    n2, c2, h2, w2 = x2.shape
    assert n == n2, "batch dims must match"
    assert x1.dtype == x2.dtype, "dtypes must match"

    diff_y = h2 - h1
    diff_x = w2 - w1
    left, right = diff_x // 2, diff_x - diff_x // 2
    top, bottom = diff_y // 2, diff_y - diff_y // 2

    # F.pad with negative amounts crops; do that with static slicing outside
    # the kernel.  Positive padding happens inside the kernel.
    crop_l, crop_r = max(0, -left), max(0, -right)
    crop_t, crop_b = max(0, -top), max(0, -bottom)
    if crop_l or crop_r or crop_t or crop_b:
        x1 = x1[:, :, crop_t:h1 - crop_b, crop_l:w1 - crop_r]
    h1c, w1c = x1.shape[2], x1.shape[3]
    pad_top, pad_bottom = max(0, top), max(0, bottom)
    pad_left, pad_right = max(0, left), max(0, right)

    c_out = c1 + c2
    dtype = x2.dtype
    itemsize = dtype.itemsize
    hw2 = h2 * w2
    hw1 = h1c * w1c

    # Lane-dense (flattened H*W) layout: usable when no width padding is
    # needed and channel tiles can respect the packed sublane granularity.
    sub_mult = 8 * max(1, 4 // itemsize)
    use_flat = (pad_left == 0 and pad_right == 0 and c2 % sub_mult == 0)

    tc1 = tc2 = None
    if use_flat:
        tc2 = _pick_channel_tile(c2, c2, hw2, hw2, itemsize, sub_mult)
        tc1 = _pick_channel_tile(c2, c1, hw1, hw2, itemsize, sub_mult)
        if tc1 is None or tc2 is None:
            use_flat = False
    if not use_flat:
        tc2 = _pick_channel_tile(c2, c2, hw2, hw2, itemsize, 1)
        tc1 = _pick_channel_tile(c2, c1, hw1, hw2, itemsize, 1)

    nc2 = c2 // tc2              # exact: tc2 divides c2
    nc1 = -(-c1 // tc1)          # last x1 tile may overhang; Pallas masks it
    c2_blocks = c2 // tc1        # out channel-block offset of the x1 half

    if use_flat:
        x2_in = x2.reshape(n, c2, hw2)
        x1_in = x1.reshape(n, c1, hw1)
        out_struct = jax.ShapeDtypeStruct((n, c_out, hw2), dtype)
        copy_in_spec = pl.BlockSpec((1, tc2, hw2), lambda i, j: (i, j, 0))
        copy_out_spec = pl.BlockSpec((1, tc2, hw2), lambda i, j: (i, j, 0))
        pad_in_spec = pl.BlockSpec((1, tc1, hw1), lambda i, j: (i, j, 0))
        pad_out_spec = pl.BlockSpec(
            (1, tc1, hw2), lambda i, j: (i, c2_blocks + j, 0))
        pad_kernel = functools.partial(
            _pad_kernel_flat, pad_top=pad_top, pad_bottom=pad_bottom, w=w2)
    else:
        x2_in, x1_in = x2, x1
        out_struct = jax.ShapeDtypeStruct((n, c_out, h2, w2), dtype)
        copy_in_spec = pl.BlockSpec((1, tc2, h2, w2), lambda i, j: (i, j, 0, 0))
        copy_out_spec = pl.BlockSpec((1, tc2, h2, w2), lambda i, j: (i, j, 0, 0))
        pad_in_spec = pl.BlockSpec((1, tc1, h1c, w1c), lambda i, j: (i, j, 0, 0))
        pad_out_spec = pl.BlockSpec(
            (1, tc1, h2, w2), lambda i, j: (i, c2_blocks + j, 0, 0))
        pad_kernel = functools.partial(
            _pad_kernel_4d, pad_top=pad_top, pad_bottom=pad_bottom,
            pad_left=pad_left, pad_right=pad_right)

    dims = ("parallel", "parallel")

    # Pass 1: pure pipelined copy of x2 into out[:, :C2, ...].  The x1 half of
    # the buffer is left untouched; pass 2 fills it.
    out = pl.pallas_call(
        _copy_kernel,
        out_shape=out_struct,
        grid_spec=pltpu.PrefetchScalarGridSpec(
            num_scalar_prefetch=0,
            grid=(n, nc2),
            in_specs=[copy_in_spec],
            out_specs=copy_out_spec,
        ),
        compiler_params=pltpu.CompilerParams(dimension_semantics=dims),
        cost_estimate=pl.CostEstimate(
            flops=0, transcendentals=0,
            bytes_accessed=2 * x2.size * itemsize),
    )(x2_in)

    # Pass 2: compose zero-padded x1 tiles in registers and store them into
    # out[:, C2:, ...].  `out` is aliased in-place so the x2 half (written by
    # pass 1) is preserved and never re-staged through VMEM.
    out = pl.pallas_call(
        pad_kernel,
        out_shape=out_struct,
        grid_spec=pltpu.PrefetchScalarGridSpec(
            num_scalar_prefetch=0,
            grid=(n, nc1),
            in_specs=[pad_in_spec, pl.BlockSpec(memory_space=pl.ANY)],
            out_specs=pad_out_spec,
        ),
        input_output_aliases={1: 0},
        compiler_params=pltpu.CompilerParams(dimension_semantics=dims),
        cost_estimate=pl.CostEstimate(
            flops=0, transcendentals=0,
            bytes_accessed=(x1_in.size + c1 * hw2) * itemsize),
    )(x1_in, out)

    if use_flat:
        out = out.reshape(n, c_out, h2, w2)
    return out


concat_forward = jax.jit(_concat_impl)


if __name__ == "__main__":
    key = jax.random.PRNGKey(0)

    def _reference(x1, x2):
        dy = x2.shape[2] - x1.shape[2]
        dx = x2.shape[3] - x1.shape[3]
        top, bottom = dy // 2, dy - dy // 2
        left, right = dx // 2, dx - dx // 2
        x1p = jax.lax.pad(
            x1, jnp.array(0, x1.dtype),
            ((0, 0, 0), (0, 0, 0), (top, bottom, 0), (left, right, 0)))
        return jnp.concatenate([x2, x1p], axis=1)

    cases = [
        # pad both H and W, unaligned pads (4-D path)
        ((2, 6, 12, 14), (2, 4, 16, 16)),
        # equal W, smaller H, channels % 8 == 0 (lane-dense flat path)
        ((2, 8, 12, 16), (2, 8, 16, 16)),
        # identical spatial dims (flat path, pure concat)
        ((2, 8, 16, 16), (2, 8, 16, 16)),
        # x1 larger than x2 -> negative pad (crop) path
        ((2, 6, 18, 16), (2, 4, 16, 16)),
    ]

    for s1, s2 in cases:
        k1, k2, key = jax.random.split(key, 3)
        x1 = jax.random.normal(k1, s1, dtype=jnp.float32)
        x2 = jax.random.normal(k2, s2, dtype=jnp.float32)

        out = jax.block_until_ready(concat_forward(x1, x2))
        ref = _reference(x1, x2)

        assert out.shape == ref.shape, (s1, s2, out.shape, ref.shape)
        assert jnp.allclose(out, ref), f"mismatch for shapes {s1} vs {s2}"

    print("KERNEL_OK")
</pallas_src>

<mosaic_0001>
module attributes {stable_mosaic.version = 11 : i64} {
  func.func @_copy_kernel(%arg0: i32, %arg1: i32, %arg2: memref<1x4x16x16xf32, #tpu.memory_space<vmem>>, %arg3: memref<1x4x16x16xf32, #tpu.memory_space<vmem>>) attributes {dimension_semantics = [#tpu.dimension_semantics<parallel>, #tpu.dimension_semantics<parallel>], iteration_bounds = array<i64: 2, 1>, scalar_prefetch = 0 : i64, scratch_operands = 0 : i64, tpu.core_type = #tpu.core_type<tc>, window_params = [{transform_indices = @transform_0, window_bounds = array<i64: 1, 4, 16, 16>}, {transform_indices = @transform_1, window_bounds = array<i64: 1, 4, 16, 16>}]} {
    %c0 = arith.constant 0 : index
    %c0_0 = arith.constant 0 : index
    %c0_1 = arith.constant 0 : index
    %c0_2 = arith.constant 0 : index
    %0 = vector.load %arg2[%c0, %c0_0, %c0_1, %c0_2] : memref<1x4x16x16xf32, #tpu.memory_space<vmem>>, vector<1x4x16x16xf32>
    %c0_3 = arith.constant 0 : index
    %c0_4 = arith.constant 0 : index
    %c0_5 = arith.constant 0 : index
    %c0_6 = arith.constant 0 : index
    %1 = vector.load %arg3[%c0_3, %c0_4, %c0_5, %c0_6] : memref<1x4x16x16xf32, #tpu.memory_space<vmem>>, vector<1x4x16x16xf32>
    tpu.vector_store %arg3[%c0_3, %c0_4, %c0_5, %c0_6], %0 {strides = array<i32>} : memref<1x4x16x16xf32, #tpu.memory_space<vmem>>, vector<1x4x16x16xf32>,
    return
  }
  func.func @transform_0(%arg0: i32, %arg1: i32) -> (i32, i32, i32, i32) {
    %c0_i32 = arith.constant 0 : i32
    %c0_i32_0 = arith.constant 0 : i32
    %c0_i32_1 = arith.constant 0 : i32
    return %arg0, %arg1, %c0_i32, %c0_i32_0 : i32, i32, i32, i32
  }
  func.func @transform_1(%arg0: i32, %arg1: i32) -> (i32, i32, i32, i32) {
    %c0_i32 = arith.constant 0 : i32
    %c0_i32_0 = arith.constant 0 : i32
    %c0_i32_1 = arith.constant 0 : i32
    return %arg0, %arg1, %c0_i32, %c0_i32_0 : i32, i32, i32, i32
  }
}

module attributes {stable_mosaic.version = 11 : i64} {
  func.func @_pad_kernel_4d(%arg0: i32, %arg1: i32, %arg2: memref<1x4x12x14xf32, #tpu.memory_space<vmem>>, %arg3: memref<2x10x16x16xf32, #tpu.memory_space<any>>, %arg4: memref<1x4x16x16xf32, #tpu.memory_space<vmem>>) attributes {dimension_semantics = [#tpu.dimension_semantics<parallel>, #tpu.dimension_semantics<parallel>], iteration_bounds = array<i64: 2, 2>, scalar_prefetch = 0 : i64, scratch_operands = 0 : i64, tpu.core_type = #tpu.core_type<tc>, window_params = [{transform_indices = @transform_0, window_bounds = array<i64: 1, 4, 12, 14>}, {}, {transform_indices = @transform_2, window_bounds = array<i64: 1, 4, 16, 16>}]} {
    %c0 = arith.constant 0 : index
    %c0_0 = arith.constant 0 : index
    %c0_1 = arith.constant 0 : index
    %c0_2 = arith.constant 0 : index
    %0 = vector.load %arg2[%c0, %c0_0, %c0_1, %c0_2] : memref<1x4x12x14xf32, #tpu.memory_space<vmem>>, vector<1x4x12x14xf32>
    %cst = arith.constant 0.000000e+00 : f32
    %1 = vector.broadcast %cst : f32 to vector<1x4x12x1xf32>
    %cst_3 = arith.constant 0.000000e+00 : f32
    %2 = vector.broadcast %cst_3 : f32 to vector<1x4x12x1xf32>
    %3 = tpu.concatenate %1, %0, %2 in 3 : vector<1x4x12x1xf32>, vector<1x4x12x14xf32>, vector<1x4x12x1xf32> -> vector<1x4x12x16xf32>
    %cst_4 = arith.constant 0.000000e+00 : f32
    %4 = vector.broadcast %cst_4 : f32 to vector<1x4x2x16xf32>
    %c0_5 = arith.constant 0 : index
    %c0_6 = arith.constant 0 : index
    %c0_7 = arith.constant 0 : index
    %c0_8 = arith.constant 0 : index
    %5 = vector.load %arg4[%c0_5, %c0_6, %c0_7, %c0_8] : memref<1x4x16x16xf32, #tpu.memory_space<vmem>>, vector<1x4x2x16xf32>
    tpu.vector_store %arg4[%c0_5, %c0_6, %c0_7, %c0_8], %4 {strides = array<i32>} : memref<1x4x16x16xf32, #tpu.memory_space<vmem>>, vector<1x4x2x16xf32>,
    %c0_9 = arith.constant 0 : index
    %c0_10 = arith.constant 0 : index
    %c2 = arith.constant 2 : index
    %c0_11 = arith.constant 0 : index
    %6 = vector.load %arg4[%c0_9, %c0_10, %c2, %c0_11] : memref<1x4x16x16xf32, #tpu.memory_space<vmem>>, vector<1x4x12x16xf32>
    tpu.vector_store %arg4[%c0_9, %c0_10, %c2, %c0_11], %3 {strides = array<i32>} : memref<1x4x16x16xf32, #tpu.memory_space<vmem>>, vector<1x4x12x16xf32>,
    %cst_12 = arith.constant 0.000000e+00 : f32
    %7 = vector.broadcast %cst_12 : f32 to vector<1x4x2x16xf32>
    %c0_13 = arith.constant 0 : index
    %c0_14 = arith.constant 0 : index
    %c14 = arith.constant 14 : index
    %c0_15 = arith.constant 0 : index
    %8 = vector.load %arg4[%c0_13, %c0_14, %c14, %c0_15] : memref<1x4x16x16xf32, #tpu.memory_space<vmem>>, vector<1x4x2x16xf32>
    tpu.vector_store %arg4[%c0_13, %c0_14, %c14, %c0_15], %7 {strides = array<i32>} : memref<1x4x16x16xf32, #tpu.memory_space<vmem>>, vector<1x4x2x16xf32>,
    return
  }
  func.func @transform_0(%arg0: i32, %arg1: i32) -> (i32, i32, i32, i32) {
    %c0_i32 = arith.constant 0 : i32
    %c0_i32_0 = arith.constant 0 : i32
    %c0_i32_1 = arith.constant 0 : i32
    return %arg0, %arg1, %c0_i32, %c0_i32_0 : i32, i32, i32, i32
  }
  func.func @transform_2(%arg0: i32, %arg1: i32) -> (i32, i32, i32, i32) {
    %c1_i32 = arith.constant 1 : i32
    %0 = arith.addi %c1_i32, %arg1 : i32
    %c0_i32 = arith.constant 0 : i32
    %c0_i32_0 = arith.constant 0 : i32
    %c0_i32_1 = arith.constant 0 : i32
    return %arg0, %0, %c0_i32, %c0_i32_0 : i32, i32, i32, i32
  }
}

</mosaic_0001>

<llo_original>
// kernel: _concat_impl.2
$region0: #{_concat_impl.2}
  #allocation0 [shape = 'u32[]', space=smem, size = 0x4, offset = 0x4, fixed_abs, tag = 'smem constant byte address 0x4 - core index']
  #allocation1 [shape = 'u32[144,128]{1,0:T(1,128)}', space=vmem, size = 0x12000, scoped, tag = 'internal scratch']
  %s0 = inlined_call_operand.vmem [shape: f32[2,4,16,16], index: 0, kind: input, shape index: {}]
  %s1 = inlined_call_operand.hbm [shape: f32[2,10,16,16], index: 1, kind: output, shape index: {}]
  %s2 = sld [smem:[#allocation0]]
  $region37: #{_concat_impl.2} parent=0
    _
  %s4 = ssub.s32 1, %s2
  %s5 = scalar_select 0, %s4, %s2
  $region1: #{_concat_impl.2} parent=0
    #allocation2 [shape = 'u8[65536]{0}', space=vmem, size = 0x10000, scoped, tag = 'output window, operand 0']
    #allocation3 [shape = 's32[2]{0}', space=sflag, size = 0x8, scoped, tag = 'scoped memory for _concat_impl.2']
    %6 = vsyncpa [#allocation3], 0
    %s7 = scalar_lea.sflag [#allocation3], 1
    %8 = vsyncpa %s7, 0
    loop: start=0, step=1, limit=4
    $region2: #{_concat_impl.2} parent=1 // loop_pre_header
      _
    $region3: #{_concat_impl.2} parent=1 // loop_header
      %s10 = sphi 0, %s14
      %p11 = scmp.ge.s32.totalorder %s10, 4
      %s17 = sphi 0, %s29
      %s18 = sphi 0, %s25
      %s19 = sphi 0, %s17
      %s20 = sphi 0, %s18
      %s21 = sphi 0, %s19
      %s22 = sphi 0, %s20
      %s34 = sphi 0, %s36
      %s37 = sphi 0, %s34
      %s38 = sphi 0, %s37
      %s54 = sphi 0, %s38
      %s62 = sphi 0, %s64
      %s65 = sphi 0, %s62
      %s66 = sphi 0, %s65
      %s82 = sphi 0, %s66
    $region4: #{_concat_impl.2} parent=1 // loop_header_branch
      %13 = sbr.rel (%p11) target = $region8
    $region5: #{_concat_impl.2} parent=1 // loop_body
      %s15 = ssub.s32 %s10, 1
      %s16 = ssub.s32 %s10, 2
      %s23 = sadd.s32 1, %s18
      %p24 = scmp.ge.s32.totalorder %s23, 1
      %s25 = scalar_select %p24, 0, %s23
      %s26 = sadd.s32 1, %s17
      %s27 = scalar_select %p24, %s26, %s17
      %p28 = scmp.ge.s32.totalorder %s27, 2
      %s29 = scalar_select %p28, 0, %s27
      %s30 = ssub.s32 %s17, %s29
      %s31 = ssub.s32 %s18, %s25
      %s32 = sor.u32 %s30, %s31
      %p33 = scmp.eq.s32.totalorder %s32, 0
      %s35 = sadd.s32 %s34, 1
      %s36 = scalar_select %p33, %s34, %s35
      %p39 = pneg %p33
      %p40 = scmp.eq.s32.totalorder %s10, 1
      %p41 = por %p39, %p40
      %p42 = scmp.ne.s32.totalorder %s34, %s37
      %p43 = scmp.eq.s32.totalorder %s10, 0
      %p44 = por %p42, %p43
      %p45 = scmp.ne.s32.totalorder %s34, %s37
      %p46 = scmp.eq.s32.totalorder %s15, 1
      %p47 = por %p45, %p46
      %p48 = scmp.ne.s32.totalorder %s37, %s38
      %p49 = scmp.eq.s32.totalorder %s15, 0
      %p50 = por %p48, %p49
      %p51 = scmp.ne.s32.totalorder %s37, %s38
      %p52 = scmp.eq.s32.totalorder %s16, 1
      %p53 = por %p51, %p52
      %p55 = scmp.ne.s32.totalorder %s38, %s54
      %p56 = scmp.eq.s32.totalorder %s16, 0
      %p57 = por %p55, %p56
      %s58 = ssub.s32 %s17, %s29
      %s59 = ssub.s32 %s18, %s25
      %s60 = sor.u32 %s58, %s59
      %p61 = scmp.eq.s32.totalorder %s60, 0
      %s63 = sadd.s32 %s62, 1
      %s64 = scalar_select %p61, %s62, %s63
      %p67 = pneg %p61
      %p68 = scmp.eq.s32.totalorder %s10, 1
      %p69 = por %p67, %p68
      %p70 = scmp.ne.s32.totalorder %s62, %s65
      %p71 = scmp.eq.s32.totalorder %s10, 0
      %p72 = por %p70, %p71
      %p73 = scmp.ne.s32.totalorder %s62, %s65
      %p74 = scmp.eq.s32.totalorder %s15, 1
      %p75 = por %p73, %p74
      %p76 = scmp.ne.s32.totalorder %s65, %s66
      %p77 = scmp.eq.s32.totalorder %s15, 0
      %p78 = por %p76, %p77
      %p79 = scmp.ne.s32.totalorder %s65, %s66
      %p80 = scmp.eq.s32.totalorder %s16, 1
      %p81 = por %p79, %p80
      %p83 = scmp.ne.s32.totalorder %s66, %s82
      %p84 = scmp.eq.s32.totalorder %s16, 0
      %p85 = por %p83, %p84
      %p86 = scmp.le.s32.totalorder 1, %s10
      %p87 = scmp.lt.s32.totalorder %s10, 3
      %p88 = pnand %p86, %p87
      %p89 = pneg %p88
      // Predicated region
      $region9: #{_concat_impl.2} parent=5 // pred_check
        _
      $region10: #{_concat_impl.2} parent=5 // pred_check_branch
        %91 = sbr.rel (%p88) target = $region12
      $region11: #{_concat_impl.2} parent=5 // pred_region
        %s92 = ssub.s32 %s10, 1
      $region12: #{_concat_impl.2} parent=5 // pred_fallthru
        _
      %p93 = scmp.lt.s32.totalorder %s10, 2
      // Predicated region
      $region13: #{_concat_impl.2} parent=5 // pred_check
        %p94 = pneg %p93
      $region14: #{_concat_impl.2} parent=5 // pred_check_branch
        %96 = sbr.rel (%p94) target = $region16
      $region15: #{_concat_impl.2} parent=5 // pred_region
        // Predicated region
        $region17: #{_concat_impl.2} parent=15 // pred_check
          %p97 = pneg %p44
        $region18: #{_concat_impl.2} parent=15 // pred_check_branch
          %99 = sbr.rel (%p97) target = $region20
        $region19: #{_concat_impl.2} parent=15 // pred_region
          %s100 = smul.u32 4, %s18
          %p101 = scmp.lt.s32.totalorder %s17, 1
          %s102 = scalar_select %p101, %s17, 1
          %p103 = scmp.lt.s32.totalorder %s100, 3
          %s104 = scalar_select %p103, %s100, 3
          %s105 = smul.addr %s104, 2
          %s106 = smul.addr %s102, 8
          %s107 = sadd.s32 %s105, %s106
          %s108 = smul.addr %s107, 8
          %s109 = scalar_lea.vmem %s0, %s108
          %s110 = smul.u32 4, %s18
        $region20: #{_concat_impl.2} parent=15 // pred_fallthru
          _
      $region16: #{_concat_impl.2} parent=5 // pred_fallthru
        _
      %p111 = scmp.le.s32.totalorder 1, %s10
      %p112 = scmp.lt.s32.totalorder %s10, 3
      %p113 = pnand %p111, %p112
      %p114 = pneg %p113
      // Predicated region
      $region21: #{_concat_impl.2} parent=5 // pred_check
        _
      $region22: #{_concat_impl.2} parent=5 // pred_check_branch
        %116 = sbr.rel (%p113) target = $region24
      $region23: #{_concat_impl.2} parent=5 // pred_region
        %s117 = ssub.s32 %s10, 1
        %s118 = smul.u32 4, %s20
        %p119 = scmp.lt.s32.totalorder %s19, 1
        %s120 = scalar_select %p119, %s19, 1
        %p121 = scmp.lt.s32.totalorder %s118, 3
        %s122 = scalar_select %p121, %s118, 3
        %s123 = smul.addr %s122, 2
        %s124 = smul.addr %s120, 8
        %s125 = sadd.s32 %s123, %s124
        %s126 = smul.addr %s125, 8
        %s127 = scalar_lea.vmem %s0, %s126
        %p128 = pneg %p50
        %p129 = pneg %p47
        %p130 = pneg %p78
        %p131 = pneg %p75
        %s132 = sand.u32 %s65, 1
        %s133 = scalar_lea.sflag [#allocation3], %s132
        %s134 = sand.u32 %s65, 1
        %s135 = smul.addr %s134, 64
        %s136 = scalar_lea.vmem [#allocation2], %s135
        %s137 = smul.u32 4, %s20
        %p138 = scmp.lt.s32.totalorder %s19, 1
        %s139 = scalar_select %p138, %s19, 1
        %p140 = scmp.lt.s32.totalorder %s137, 3
        %s141 = scalar_select %p140, %s137, 3
        %s142 = smul.addr %s141, 2
        %s143 = smul.addr %s139, 8
        %s144 = sadd.s32 %s142, %s143
        %s145 = smul.addr %s144, 8
        %s146 = scalar_lea.vmem %s0, %s145
        %s147 = smul.u32 4, %s20
        %s148 = smul.u32 4, %s20
        %s149 = ssub.s32 10, %s148
        %p150 = scmp.lt.s32.totalorder %s149, 4
        %s151 = scalar_select %p150, %s149, 4
        %s152 = smul.u32 128, %s151
        %s153 = smul.u32 %s152, 2
        %v154 = vld [vmem:[%s146] sm:$0xff]
        %v155 = vld [vmem:[%s146 + $0x8] sm:$0xff]
        %v156 = vld [vmem:[%s146 + $0x10] sm:$0xff]
        %v157 = vld [vmem:[%s146 + $0x18] sm:$0xff]
        %v158 = vld [vmem:[%s146 + $0x20] sm:$0xff]
        %v159 = vld [vmem:[%s146 + $0x28] sm:$0xff]
        %v160 = vld [vmem:[%s146 + $0x30] sm:$0xff]
        %v161 = vld [vmem:[%s146 + $0x38] sm:$0xff]
        %vm162 = vcmask 130048
        %163 = vst.msk [vmem:[%s136] sm:$0xff] %vm162, %v154
        %164 = vst.msk [vmem:[%s136 + $0x8] sm:$0xff] %vm162, %v155
        %165 = vst.msk [vmem:[%s136 + $0x10] sm:$0xff] %vm162, %v156
        %166 = vst.msk [vmem:[%s136 + $0x18] sm:$0xff] %vm162, %v157
        %167 = vst.msk [vmem:[%s136 + $0x20] sm:$0xff] %vm162, %v158
        %168 = vst.msk [vmem:[%s136 + $0x28] sm:$0xff] %vm162, %v159
        %169 = vst.msk [vmem:[%s136 + $0x30] sm:$0xff] %vm162, %v160
        %170 = vst.msk [vmem:[%s136 + $0x38] sm:$0xff] %vm162, %v161
        %s171 = sand.u32 %s65, 1
        %s172 = scalar_lea.sflag [#allocation3], %s171
        %s173 = sand.u32 %s65, 1
        %s174 = smul.addr %s173, 64
        %s175 = scalar_lea.vmem [#allocation2], %s174
        // Predicated region
        $region25: #{_concat_impl.2} parent=23 // pred_check
          %p176 = pneg %p75
        $region26: #{_concat_impl.2} parent=23 // pred_check_branch
          %178 = sbr.rel (%p176) target = $region28
        $region27: #{_concat_impl.2} parent=23 // pred_region
          %s179 = smul.u32 4, %s20
          %s180 = ssub.s32 10, %s179
          %p181 = scmp.lt.s32.totalorder %s180, 4
          %s182 = scalar_select %p181, %s180, 4
          %s183 = smul.u32 128, %s182
          %s184 = smul.u32 %s183, 2
          %s186 = ssub.s32 1024, %s184
          %187 = vsyncadd %s172, %s186
          %p188 = scmp.ne.s32.totalorder 0, %s184
          %s189 = smul.addr %s179, 2
          %s190 = smul.addr %s19, 20
          %s191 = sadd.s32 %s189, %s190
          %s192 = smul.addr %s191, 128
          %s193 = scalar_lea.hbm %s1, %s192
          %s194 = smul.u32 %s182, 2
          %s195 = smul.u32 8, %s194
          %s196 = sshll.u32 %s175, 4
          %s197 = int_to_ptr.vmem [resolvable:$true] %s196
          %s198 = sshll.u32 %s195, 4
          %202 = dma.vmem_to_hbm [thread:$0]  (%p188), %s197, %s198, %s193, %s172, 128, 128, 8
        $region28: #{_concat_impl.2} parent=23 // pred_fallthru
          _
      $region24: #{_concat_impl.2} parent=5 // pred_fallthru
        _
      %p203 = scmp.le.s32.totalorder 2, %s10
      // Predicated region
      $region29: #{_concat_impl.2} parent=5 // pred_check
        %p204 = pneg %p203
      $region30: #{_concat_impl.2} parent=5 // pred_check_branch
        %206 = sbr.rel (%p204) target = $region32
      $region31: #{_concat_impl.2} parent=5 // pred_region
        %s207 = ssub.s32 %s10, 2
        // Predicated region
        $region33: #{_concat_impl.2} parent=31 // pred_check
          %p208 = pneg %p81
        $region34: #{_concat_impl.2} parent=31 // pred_check_branch
          %210 = sbr.rel (%p208) target = $region36
        $region35: #{_concat_impl.2} parent=31 // pred_region
          %s211 = sand.u32 %s66, 1
          %s212 = scalar_lea.sflag [#allocation3], %s211
          %s213 = sand.u32 %s66, 1
          %s214 = smul.addr %s213, 64
          %s215 = scalar_lea.vmem [#allocation2], %s214
          %216 = dma.done %s212, 1024
        $region36: #{_concat_impl.2} parent=31 // pred_fallthru
          _
      $region32: #{_concat_impl.2} parent=5 // pred_fallthru
        _
    $region6: #{_concat_impl.2} parent=1 // loop_footer
      %s14 = sadd.s32 1, %s10
    $region7: #{_concat_impl.2} parent=1 // loop_footer_branch
      %9 = sbr.rel target = $region3
    $region8: #{_concat_impl.2} parent=1 // loop_exit
      _
    %217 = vsyncpa [#allocation3], 1
    %s218 = scalar_lea.sflag [#allocation3], 1
    %219 = vsyncpa %s218, 1

// kernel: _concat_impl.3
$region0: #{_concat_impl.3}
  #allocation0 [shape = 'u32[]', space=smem, size = 0x4, offset = 0x4, fixed_abs, tag = 'smem constant byte address 0x4 - core index']
  #allocation1 [shape = 'u32[144,128]{1,0:T(1,128)}', space=vmem, size = 0x12000, scoped, tag = 'internal scratch']
  %s0 = inlined_call_operand.vmem [shape: f32[2,6,12,14], index: 0, kind: input, shape index: {}]
  %s1 = inlined_call_operand.hbm [shape: f32[2,10,16,16], index: 1, kind: input, shape index: {}, may-alias: {1,2}]
  %s2 = inlined_call_operand.hbm [shape: f32[2,10,16,16], index: 2, kind: output, shape index: {}, may-alias: {1,2}]
  %s3 = sld [smem:[#allocation0]]
  $region37: #{_concat_impl.3} parent=0
    _
  %s5 = ssub.s32 1, %s3
  %s6 = scalar_select 0, %s5, %s3
  $region1: #{_concat_impl.3} parent=0
    #allocation2 [shape = 'u8[65536]{0}', space=vmem, size = 0x10000, scoped, tag = 'output window, operand 0']
    #allocation3 [shape = 's32[2]{0}', space=sflag, size = 0x8, scoped, tag = 'scoped memory for _concat_impl.3']
    %7 = vsyncpa [#allocation3], 0
    %s8 = scalar_lea.sflag [#allocation3], 1
    %9 = vsyncpa %s8, 0
    loop: start=0, step=1, limit=6
    $region2: #{_concat_impl.3} parent=1 // loop_pre_header
      _
    $region3: #{_concat_impl.3} parent=1 // loop_header
      %s11 = sphi 0, %s15
      %p12 = scmp.ge.s32.totalorder %s11, 6
      %s18 = sphi 0, %s30
      %s19 = sphi 0, %s26
      %s20 = sphi 0, %s18
      %s21 = sphi 0, %s19
      %s22 = sphi 0, %s20
      %s23 = sphi 0, %s21
      %s35 = sphi 0, %s37
      %s38 = sphi 0, %s35
      %s39 = sphi 0, %s38
      %s55 = sphi 0, %s39
      %s65 = sphi 0, %s67
      %s68 = sphi 0, %s65
      %s69 = sphi 0, %s68
      %s85 = sphi 0, %s69
    $region4: #{_concat_impl.3} parent=1 // loop_header_branch
      %14 = sbr.rel (%p12) target = $region8
    $region5: #{_concat_impl.3} parent=1 // loop_body
      %s16 = ssub.s32 %s11, 1
      %s17 = ssub.s32 %s11, 2
      %s24 = sadd.s32 1, %s19
      %p25 = scmp.ge.s32.totalorder %s24, 2
      %s26 = scalar_select %p25, 0, %s24
      %s27 = sadd.s32 1, %s18
      %s28 = scalar_select %p25, %s27, %s18
      %p29 = scmp.ge.s32.totalorder %s28, 2
      %s30 = scalar_select %p29, 0, %s28
      %s31 = ssub.s32 %s18, %s30
      %s32 = ssub.s32 %s19, %s26
      %s33 = sor.u32 %s31, %s32
      %p34 = scmp.eq.s32.totalorder %s33, 0
      %s36 = sadd.s32 %s35, 1
      %s37 = scalar_select %p34, %s35, %s36
      %p40 = pneg %p34
      %p41 = scmp.eq.s32.totalorder %s11, 3
      %p42 = por %p40, %p41
      %p43 = scmp.ne.s32.totalorder %s35, %s38
      %p44 = scmp.eq.s32.totalorder %s11, 0
      %p45 = por %p43, %p44
      %p46 = scmp.ne.s32.totalorder %s35, %s38
      %p47 = scmp.eq.s32.totalorder %s16, 3
      %p48 = por %p46, %p47
      %p49 = scmp.ne.s32.totalorder %s38, %s39
      %p50 = scmp.eq.s32.totalorder %s16, 0
      %p51 = por %p49, %p50
      %p52 = scmp.ne.s32.totalorder %s38, %s39
      %p53 = scmp.eq.s32.totalorder %s17, 3
      %p54 = por %p52, %p53
      %p56 = scmp.ne.s32.totalorder %s39, %s55
      %p57 = scmp.eq.s32.totalorder %s17, 0
      %p58 = por %p56, %p57
      %s59 = sadd.s32 %s19, 1
      %s60 = sadd.s32 %s26, 1
      %s61 = ssub.s32 %s18, %s30
      %s62 = ssub.s32 %s59, %s60
      %s63 = sor.u32 %s61, %s62
      %p64 = scmp.eq.s32.totalorder %s63, 0
      %s66 = sadd.s32 %s65, 1
      %s67 = scalar_select %p64, %s65, %s66
      %p70 = pneg %p64
      %p71 = scmp.eq.s32.totalorder %s11, 3
      %p72 = por %p70, %p71
      %p73 = scmp.ne.s32.totalorder %s65, %s68
      %p74 = scmp.eq.s32.totalorder %s11, 0
      %p75 = por %p73, %p74
      %p76 = scmp.ne.s32.totalorder %s65, %s68
      %p77 = scmp.eq.s32.totalorder %s16, 3
      %p78 = por %p76, %p77
      %p79 = scmp.ne.s32.totalorder %s68, %s69
      %p80 = scmp.eq.s32.totalorder %s16, 0
      %p81 = por %p79, %p80
      %p82 = scmp.ne.s32.totalorder %s68, %s69
      %p83 = scmp.eq.s32.totalorder %s17, 3
      %p84 = por %p82, %p83
      %p86 = scmp.ne.s32.totalorder %s69, %s85
      %p87 = scmp.eq.s32.totalorder %s17, 0
      %p88 = por %p86, %p87
      %p89 = scmp.le.s32.totalorder 1, %s11
      %p90 = scmp.lt.s32.totalorder %s11, 5
      %p91 = pnand %p89, %p90
      %p92 = pneg %p91
      // Predicated region
      $region9: #{_concat_impl.3} parent=5 // pred_check
        _
      $region10: #{_concat_impl.3} parent=5 // pred_check_branch
        %94 = sbr.rel (%p91) target = $region12
      $region11: #{_concat_impl.3} parent=5 // pred_region
        %s95 = ssub.s32 %s11, 1
      $region12: #{_concat_impl.3} parent=5 // pred_fallthru
        _
      %p96 = scmp.lt.s32.totalorder %s11, 4
      // Predicated region
      $region13: #{_concat_impl.3} parent=5 // pred_check
        %p97 = pneg %p96
      $region14: #{_concat_impl.3} parent=5 // pred_check_branch
        %99 = sbr.rel (%p97) target = $region16
      $region15: #{_concat_impl.3} parent=5 // pred_region
        // Predicated region
        $region17: #{_concat_impl.3} parent=15 // pred_check
          %p100 = pneg %p45
        $region18: #{_concat_impl.3} parent=15 // pred_check_branch
          %102 = sbr.rel (%p100) target = $region20
        $region19: #{_concat_impl.3} parent=15 // pred_region
          %s103 = smul.u32 4, %s19
          %s104 = ssub.s32 6, %s103
          %p105 = scmp.lt.s32.totalorder %s104, 4
          %s106 = scalar_select %p105, %s104, 4
          %s107 = smul.u32 128, %s106
          %s108 = smul.u32 %s107, 2
          %p109 = scmp.lt.s32.totalorder %s18, 1
          %s110 = scalar_select %p109, %s18, 1
          %p111 = scmp.lt.s32.totalorder %s103, 5
          %s112 = scalar_select %p111, %s103, 5
          %s113 = smul.addr %s112, 2
          %s114 = smul.addr %s110, 12
          %s115 = sadd.s32 %s113, %s114
          %s116 = smul.addr %s115, 8
          %s117 = scalar_lea.vmem %s0, %s116
          %s118 = smul.u32 4, %s19
          %s119 = ssub.s32 6, %s118
          %p120 = scmp.lt.s32.totalorder %s119, 4
          %s121 = scalar_select %p120, %s119, 4
          %s122 = smul.u32 128, %s121
          %s123 = smul.u32 %s122, 2
        $region20: #{_concat_impl.3} parent=15 // pred_fallthru
          _
      $region16: #{_concat_impl.3} parent=5 // pred_fallthru
        _
      %p124 = scmp.le.s32.totalorder 1, %s11
      %p125 = scmp.lt.s32.totalorder %s11, 5
      %p126 = pnand %p124, %p125
      %p127 = pneg %p126
      // Predicated region
      $region21: #{_concat_impl.3} parent=5 // pred_check
        _
      $region22: #{_concat_impl.3} parent=5 // pred_check_branch
        %129 = sbr.rel (%p126) target = $region24
      $region23: #{_concat_impl.3} parent=5 // pred_region
        %s130 = ssub.s32 %s11, 1
        %s131 = smul.u32 4, %s21
        %s132 = ssub.s32 6, %s131
        %p133 = scmp.lt.s32.totalorder %s132, 4
        %s134 = scalar_select %p133, %s132, 4
        %s135 = smul.u32 128, %s134
        %s136 = smul.u32 %s135, 2
        %p137 = scmp.lt.s32.totalorder %s20, 1
        %s138 = scalar_select %p137, %s20, 1
        %p139 = scmp.lt.s32.totalorder %s131, 5
        %s140 = scalar_select %p139, %s131, 5
        %s141 = smul.addr %s140, 2
        %s142 = smul.addr %s138, 12
        %s143 = sadd.s32 %s141, %s142
        %s144 = smul.addr %s143, 8
        %s145 = scalar_lea.vmem %s0, %s144
        %p146 = pneg %p51
        %p147 = pneg %p48
        %p148 = pneg %p81
        %p149 = pneg %p78
        %s150 = sand.u32 %s68, 1
        %s151 = scalar_lea.sflag [#allocation3], %s150
        %s152 = sand.u32 %s68, 1
        %s153 = smul.addr %s152, 64
        %s154 = scalar_lea.vmem [#allocation2], %s153
        %s155 = smul.u32 4, %s21
        %s156 = ssub.s32 6, %s155
        %p157 = scmp.lt.s32.totalorder %s156, 4
        %s158 = scalar_select %p157, %s156, 4
        %s159 = smul.u32 128, %s158
        %s160 = smul.u32 %s159, 2
        %p161 = scmp.lt.s32.totalorder %s20, 1
        %s162 = scalar_select %p161, %s20, 1
        %p163 = scmp.lt.s32.totalorder %s155, 5
        %s164 = scalar_select %p163, %s155, 5
        %s165 = smul.addr %s164, 2
        %s166 = smul.addr %s162, 12
        %s167 = sadd.s32 %s165, %s166
        %s168 = smul.addr %s167, 8
        %s169 = scalar_lea.vmem %s0, %s168
        %s170 = smul.u32 4, %s21
        %s171 = ssub.s32 6, %s170
        %p172 = scmp.lt.s32.totalorder %s171, 4
        %s173 = scalar_select %p172, %s171, 4
        %s174 = smul.u32 128, %s173
        %s175 = smul.u32 %s174, 2
        %s176 = sadd.s32 %s21, 1
        %s177 = smul.u32 4, %s176
        %s178 = ssub.s32 10, %s177
        %p179 = scmp.lt.s32.totalorder %s178, 4
        %s180 = scalar_select %p179, %s178, 4
        %s181 = smul.u32 128, %s180
        %s182 = smul.u32 %s181, 2
        %v183 = vld [vmem:[%s169] sm:$0xff]
        %v184 = vld [vmem:[%s169 + $0x8] sm:$0xf]
        %v185 = vld [vmem:[%s169 + $0x10] sm:$0xff]
        %v186 = vld [vmem:[%s169 + $0x18] sm:$0xf]
        %v187 = vld [vmem:[%s169 + $0x20] sm:$0xff]
        %v188 = vld [vmem:[%s169 + $0x28] sm:$0xf]
        %v189 = vld [vmem:[%s169 + $0x30] sm:$0xff]
        %v190 = vld [vmem:[%s169 + $0x38] sm:$0xf]
        %199 = vrot.lane.b32.xlu0 %v183, 1
        %v200 = vpop.permute.xlu0 %199
        %201 = vrot.lane.b32.xlu0 %v184, 1
        %v202 = vpop.permute.xlu0 %201
        %203 = vrot.lane.b32.xlu0 %v185, 1
        %v204 = vpop.permute.xlu0 %203
        %205 = vrot.lane.b32.xlu0 %v186, 1
        %v206 = vpop.permute.xlu0 %205
        %207 = vrot.lane.b32.xlu0 %v187, 1
        %v208 = vpop.permute.xlu0 %207
        %209 = vrot.lane.b32.xlu0 %v188, 1
        %v210 = vpop.permute.xlu0 %209
        %211 = vrot.lane.b32.xlu0 %v189, 1
        %v212 = vpop.permute.xlu0 %211
        %213 = vrot.lane.b32.xlu0 %v190, 1
        %v214 = vpop.permute.xlu0 %213
        %vm223 = vcmask 7168
        %v224 = vsel %vm223, 0.0, %v200
        %v225 = vsel %vm223, 0.0, %v202
        %v226 = vsel %vm223, 0.0, %v204
        %v227 = vsel %vm223, 0.0, %v206
        %v228 = vsel %vm223, 0.0, %v208
        %v229 = vsel %vm223, 0.0, %v210
        %v230 = vsel %vm223, 0.0, %v212
        %v231 = vsel %vm223, 0.0, %v214
        %vm232 = vcmask 121856
        %v233 = vsel %vm232, %v224, 0.0
        %v234 = vsel %vm232, %v225, 0.0
        %v235 = vsel %vm232, %v226, 0.0
        %v236 = vsel %vm232, %v227, 0.0
        %v237 = vsel %vm232, %v228, 0.0
        %v238 = vsel %vm232, %v229, 0.0
        %v239 = vsel %vm232, %v230, 0.0
        %v240 = vsel %vm232, %v231, 0.0
        %vm241 = vcmask 123904
        %242 = vst.msk [vmem:[%s154] sm:$0x3] %vm241, 0.0
        %243 = vst.msk [vmem:[%s154 + $0x10] sm:$0x3] %vm241, 0.0
        %244 = vst.msk [vmem:[%s154 + $0x20] sm:$0x3] %vm241, 0.0
        %245 = vst.msk [vmem:[%s154 + $0x30] sm:$0x3] %vm241, 0.0
        %vm246 = vcmask 130048
        %247 = vst.msk [vmem:[%s154 + $0x2] sm:$0xff] %vm246, %v233
        %vm248 = vcmask 125952
        %249 = vst.msk [vmem:[%s154 + $0xa] sm:$0xf] %vm248, %v234
        %250 = vst.msk [vmem:[%s154 + $0x12] sm:$0xff] %vm246, %v235
        %251 = vst.msk [vmem:[%s154 + $0x1a] sm:$0xf] %vm248, %v236
        %252 = vst.msk [vmem:[%s154 + $0x22] sm:$0xff] %vm246, %v237
        %253 = vst.msk [vmem:[%s154 + $0x2a] sm:$0xf] %vm248, %v238
        %254 = vst.msk [vmem:[%s154 + $0x32] sm:$0xff] %vm246, %v239
        %255 = vst.msk [vmem:[%s154 + $0x3a] sm:$0xf] %vm248, %v240
        %256 = vst.msk [vmem:[%s154 + $0xe] sm:$0x3] %vm241, 0.0
        %257 = vst.msk [vmem:[%s154 + $0x1e] sm:$0x3] %vm241, 0.0
        %258 = vst.msk [vmem:[%s154 + $0x2e] sm:$0x3] %vm241, 0.0
        %259 = vst.msk [vmem:[%s154 + $0x3e] sm:$0x3] %vm241, 0.0
        %s260 = sand.u32 %s68, 1
        %s261 = scalar_lea.sflag [#allocation3], %s260
        %s262 = sand.u32 %s68, 1
        %s263 = smul.addr %s262, 64
        %s264 = scalar_lea.vmem [#allocation2], %s263
        // Predicated region
        $region25: #{_concat_impl.3} parent=23 // pred_check
          %p265 = pneg %p78
        $region26: #{_concat_impl.3} parent=23 // pred_check_branch
          %267 = sbr.rel (%p265) target = $region28
        $region27: #{_concat_impl.3} parent=23 // pred_region
          %s268 = sadd.s32 %s21, 1
          %s269 = smul.u32 4, %s268
          %s270 = ssub.s32 10, %s269
          %p271 = scmp.lt.s32.totalorder %s270, 4
          %s272 = scalar_select %p271, %s270, 4
          %s273 = smul.u32 128, %s272
          %s274 = smul.u32 %s273, 2
          %s276 = ssub.s32 1024, %s274
          %277 = vsyncadd %s261, %s276
          %p278 = scmp.ne.s32.totalorder 0, %s274
          %s279 = smul.addr %s269, 2
          %s280 = smul.addr %s20, 20
          %s281 = sadd.s32 %s279, %s280
          %s282 = smul.addr %s281, 128
          %s283 = scalar_lea.hbm %s2, %s282
          %s284 = smul.u32 %s272, 2
          %s285 = smul.u32 8, %s284
          %s286 = sshll.u32 %s264, 4
          %s287 = int_to_ptr.vmem [resolvable:$true] %s286
          %s288 = sshll.u32 %s285, 4
          %292 = dma.vmem_to_hbm [thread:$0]  (%p278), %s287, %s288, %s283, %s261, 128, 128, 8
        $region28: #{_concat_impl.3} parent=23 // pred_fallthru
          _
      $region24: #{_concat_impl.3} parent=5 // pred_fallthru
        _
      %p293 = scmp.le.s32.totalorder 2, %s11
      // Predicated region
      $region29: #{_concat_impl.3} parent=5 // pred_check
        %p294 = pneg %p293
      $region30: #{_concat_impl.3} parent=5 // pred_check_branch
        %296 = sbr.rel (%p294) target = $region32
      $region31: #{_concat_impl.3} parent=5 // pred_region
        %s297 = ssub.s32 %s11, 2
        // Predicated region
        $region33: #{_concat_impl.3} parent=31 // pred_check
          %p298 = pneg %p84
        $region34: #{_concat_impl.3} parent=31 // pred_check_branch
          %300 = sbr.rel (%p298) target = $region36
        $region35: #{_concat_impl.3} parent=31 // pred_region
          %s301 = sand.u32 %s69, 1
          %s302 = scalar_lea.sflag [#allocation3], %s301
          %s303 = sand.u32 %s69, 1
          %s304 = smul.addr %s303, 64
          %s305 = scalar_lea.vmem [#allocation2], %s304
          %306 = dma.done %s302, 1024
        $region36: #{_concat_impl.3} parent=31 // pred_fallthru
          _
      $region32: #{_concat_impl.3} parent=5 // pred_fallthru
        _
    $region6: #{_concat_impl.3} parent=1 // loop_footer
      %s15 = sadd.s32 1, %s11
    $region7: #{_concat_impl.3} parent=1 // loop_footer_branch
      %10 = sbr.rel target = $region3
    $region8: #{_concat_impl.3} parent=1 // loop_exit
      _
    %307 = vsyncpa [#allocation3], 1
    %s308 = scalar_lea.sflag [#allocation3], 1
    %309 = vsyncpa %s308, 1

</llo_original>
